<compile_context>
chip_gen: v5e
topology: v5e:2x2
jax: 0.10.0
libtpu: 0.0.40
codegen_flags: <defaults>
</compile_context>

<pallas_src>
import jax
import jax.numpy as jnp
from jax.experimental import pallas as pl
from jax.experimental.pallas import tpu as pltpu

# ---------------- small synthetic config ----------------
BATCH = 2
IN_CH = 3
IMG = 16
PATCH = 4
GRID_HW = IMG // PATCH
NUM_PATCHES = GRID_HW * GRID_HW        # 16
SEQ = NUM_PATCHES + 1                  # 17 (CLS + patches)
SEQ_PAD = ((SEQ + 7) // 8) * 8         # 24: sublane-aligned per-image row block
PATCH_DIM = IN_CH * PATCH * PATCH      # 48
D_MODEL = 32
NUM_HEADS = 2
HEAD_DIM = D_MODEL // NUM_HEADS
MLP_DIM = 4 * D_MODEL                  # 128
FFN_NUM = 16                           # adapter bottleneck (args['ffn_num'])
NUM_BLOCKS = 2
NUM_CLASSES = 10                       # fc head size after update_fc(nb_classes)
CLASS_PAD = 128                        # lane-dense logits slab (sliced back to NUM_CLASSES)
ADAPTER_SCALE = 0.1                    # ffn_adapter_scalar = '0.1'
LN_EPS = 1e-6
PACK_W = 128                           # lane width of the packed per-layer bias slab

# rows of the packed per-layer "misc" slab
(R_LN1G, R_LN1B, R_QKVB, R_PROJB, R_LN2G, R_LN2B,
 R_FC1B, R_FC2B, R_ADDNB, R_ADUPB, NUM_MISC) = range(11)

assert MLP_DIM <= PACK_W and 3 * D_MODEL <= PACK_W and FFN_NUM <= PACK_W


def _layernorm(x, g, b):
    mu = jnp.mean(x, axis=-1, keepdims=True)
    xc = x - mu
    var = jnp.mean(xc * xc, axis=-1, keepdims=True)
    return xc * jax.lax.rsqrt(var + LN_EPS) * g + b


def _extract_patches(x_nchw):
    """NCHW image -> (B, num_patches, C*P*P), matching Conv2d(kernel=stride=P) im2col."""
    B, C, H, W = x_nchw.shape
    hp, wp = H // PATCH, W // PATCH
    p = x_nchw.reshape(B, C, hp, PATCH, wp, PATCH)
    p = p.transpose(0, 2, 4, 1, 3, 5)                                 # B, hp, wp, C, P, P
    return p.reshape(B, hp * wp, C * PATCH * PATCH)


# ---------------- Pallas forward ----------------
def adapter_vit_forward(x_nchw, params):
    f32, bf16 = jnp.float32, jnp.bfloat16
    B = x_nchw.shape[0]
    L, D, HD = NUM_BLOCKS, D_MODEL, HEAD_DIM
    M_PAD = B * SEQ_PAD
    out_rows = ((B + 7) // 8) * 8                                     # sublane-dense logits rows

    # ----- host-side data layout: per-image contiguous rows, CLS row first, pad rows zero -----
    patches = _extract_patches(x_nchw).astype(f32)                    # (B, NP, PATCH_DIM)
    xp = jnp.zeros((B, SEQ_PAD, PATCH_DIM), f32)
    xp = xp.at[:, 1:1 + NUM_PATCHES, :].set(patches)
    xp = xp.reshape(M_PAD, PATCH_DIM).astype(bf16)

    add_img = jnp.zeros((SEQ_PAD, D), f32)
    add_img = add_img.at[0, :].set(params['cls'][0] + params['pos'][0])
    add_img = add_img.at[1:1 + NUM_PATCHES, :].set(params['patch_b'][None, :] + params['pos'][1:])
    add = jnp.broadcast_to(add_img[None], (B, SEQ_PAD, D)).reshape(M_PAD, D)

    # ----- host-side weight re-layout: fused QKV with folded 1/sqrt(hd), packed biases, bf16 -----
    scale = HD ** -0.5
    qscale = jnp.concatenate([jnp.full((D,), scale, f32), jnp.ones((2 * D,), f32)])
    qkv_w = (params['qkv_w'] * qscale[None, None, :]).astype(bf16)    # (L, D, 3D)
    qkv_b = params['qkv_b'] * qscale[None, :]                         # (L, 3D) f32
    proj_w = params['proj_w'].astype(bf16)                            # (L, D, D)
    fc1_w = params['fc1_w'].astype(bf16)
    fc2_w = params['fc2_w'].astype(bf16)
    ad_dn_w = params['ad_dn_w'].astype(bf16)
    ad_up_w = params['ad_up_w'].astype(bf16)

    def pack_row(v):                                                  # (L, k) -> (L, 1, PACK_W)
        return jnp.pad(v.astype(f32), ((0, 0), (0, PACK_W - v.shape[-1])))[:, None, :]

    misc = jnp.concatenate([
        pack_row(params['ln1_g']), pack_row(params['ln1_b']),
        pack_row(qkv_b), pack_row(params['proj_b']),
        pack_row(params['ln2_g']), pack_row(params['ln2_b']),
        pack_row(params['fc1_b']), pack_row(params['fc2_b']),
        pack_row(params['ad_dn_b']), pack_row(params['ad_up_b']),
    ], axis=1)                                                        # (L, NUM_MISC, PACK_W)

    norm_g = params['norm_g'].astype(f32)                             # (1, D)
    norm_b = params['norm_b'].astype(f32)

    # CosineLinear: pre-normalize weight, fold sigma, pad to a lane-dense 128-wide slab
    w = params['fc_w']
    wn = w / jnp.maximum(jnp.sqrt(jnp.sum(w * w, axis=1, keepdims=True)), 1e-12)
    head_w = jnp.zeros((D, CLASS_PAD), f32).at[:, :NUM_CLASSES].set(
        (params['sigma'][0, 0] * wn).T).astype(bf16)

    # ---------------- patch-embed pallas_call (kept out of the block kernel) ----------------
    def embed_kernel(xp_ref, pw_ref, add_ref, o_ref):
        o_ref[...] = jnp.dot(xp_ref[...], pw_ref[...],
                             preferred_element_type=jnp.float32) + add_ref[...]

    x0 = pl.pallas_call(
        embed_kernel,
        out_shape=jax.ShapeDtypeStruct((M_PAD, D), f32),
    )(xp, params['patch_w'].astype(bf16), add)

    # ---------------- transformer-block kernel (grid over blocks) ----------------
    def kernel(x0_hbm, qkv_w_ref, proj_w_ref, fc1_w_ref, fc2_w_ref,
               ad_dn_w_ref, ad_up_w_ref, misc_ref, norm_g_ref, norm_b_ref,
               head_w_ref, out_ref, x_scratch):
        l = pl.program_id(0)
        last = pl.num_programs(0) - 1

        @pl.when(l == 0)
        def _():
            # embedded tokens stay in HBM (pl.ANY); copied into the residual scratch once.
            pltpu.sync_copy(x0_hbm, x_scratch)
            # explicit init: out block is revisited across grid steps.
            out_ref[...] = jnp.zeros_like(out_ref)

        mb = misc_ref[0]                                              # (NUM_MISC, PACK_W) f32
        ln1_g = mb[R_LN1G:R_LN1G + 1, :D_MODEL]
        ln1_b = mb[R_LN1B:R_LN1B + 1, :D_MODEL]
        qkv_bias = mb[R_QKVB:R_QKVB + 1, :3 * D_MODEL]
        proj_b = mb[R_PROJB:R_PROJB + 1, :D_MODEL]
        ln2_g = mb[R_LN2G:R_LN2G + 1, :D_MODEL]
        ln2_b = mb[R_LN2B:R_LN2B + 1, :D_MODEL]
        fc1_b = mb[R_FC1B:R_FC1B + 1, :MLP_DIM]
        fc2_b = mb[R_FC2B:R_FC2B + 1, :D_MODEL]
        ad_dn_b = mb[R_ADDNB:R_ADDNB + 1, :FFN_NUM]
        ad_up_b = mb[R_ADUPB:R_ADUPB + 1, :D_MODEL]

        x = x_scratch[...]                                            # (M_PAD, D) f32 residual

        # ---- fused QKV projection: one (M, D) x (D, 3D) matmul for all rows / heads ----
        h = _layernorm(x, ln1_g, ln1_b)
        qkv = jnp.dot(h.astype(jnp.bfloat16), qkv_w_ref[0],
                      preferred_element_type=jnp.float32) + qkv_bias  # (M_PAD, 3D)

        # key-padding mask (rows SEQ..SEQ_PAD-1 of each image) generated in-kernel via iota;
        # no materialized (M, M) attention bias anywhere.
        key_id = jax.lax.broadcasted_iota(jnp.int32, (1, SEQ_PAD), 1)
        neg = jnp.where(key_id < SEQ, 0.0, -1e30).astype(jnp.float32)  # (1, SEQ_PAD)

        def image_attention(b, q_len):
            # attention for image b; queries = first q_len rows (SEQ_PAD, or 1 == CLS only).
            base = b * SEQ_PAD
            kv = qkv[base:base + SEQ_PAD, :]
            qr = qkv[base:base + q_len, :]
            outs = []
            # TODO(synk): at real scale (12 heads) switch this to lax.fori_loop(unroll=True)
            # to bound per-head live ranges / vreg pressure.
            for hd in range(NUM_HEADS):
                qh = qr[:, hd * HEAD_DIM:(hd + 1) * HEAD_DIM]
                kh = kv[:, D_MODEL + hd * HEAD_DIM:D_MODEL + (hd + 1) * HEAD_DIM]
                vh = kv[:, 2 * D_MODEL + hd * HEAD_DIM:2 * D_MODEL + (hd + 1) * HEAD_DIM]
                s = jax.lax.dot_general(qh.astype(jnp.bfloat16), kh.astype(jnp.bfloat16),
                                        (((1,), (1,)), ((), ())),
                                        preferred_element_type=jnp.float32) + neg
                s = s - jnp.max(s, axis=-1, keepdims=True)
                p = jnp.exp(s)
                p = p * pl.reciprocal(jnp.sum(p, axis=-1, keepdims=True), approx=True)
                outs.append(jnp.dot(p.astype(jnp.bfloat16), vh.astype(jnp.bfloat16),
                                    preferred_element_type=jnp.float32))     # (q_len, HD)
            return jnp.concatenate(outs, axis=-1)                            # (q_len, D)

        def ffn(rows):
            # MLP + parallel adapter (AdaptMLP: no LN inside adapter, ReLU, scale 0.1)
            rb = rows.astype(jnp.bfloat16)
            ad = jnp.dot(rb, ad_dn_w_ref[0], preferred_element_type=jnp.float32) + ad_dn_b
            ad = jnp.maximum(ad, 0.0)
            ad = jnp.dot(ad.astype(jnp.bfloat16), ad_up_w_ref[0],
                         preferred_element_type=jnp.float32) + ad_up_b
            ad = ad * ADAPTER_SCALE
            h2 = _layernorm(rows, ln2_g, ln2_b)
            m = jnp.dot(h2.astype(jnp.bfloat16), fc1_w_ref[0],
                        preferred_element_type=jnp.float32) + fc1_b
            m = jax.nn.gelu(m)
            m = jnp.dot(m.astype(jnp.bfloat16), fc2_w_ref[0],
                        preferred_element_type=jnp.float32) + fc2_b
            return rows + m + ad

        @pl.when(l < last)
        def _():
            attn = jnp.concatenate([image_attention(b, SEQ_PAD) for b in range(B)], axis=0)
            # fused output projection: single (M, D) x (D, D) matmul over all heads/images.
            attn = jnp.dot(attn.astype(jnp.bfloat16), proj_w_ref[0],
                           preferred_element_type=jnp.float32) + proj_b
            x_scratch[...] = ffn(x + attn)

        @pl.when(l == last)
        def _():
            # only the CLS rows feed the head: restrict attention queries / FFN / head to
            # B rows (padded to a full 8-sublane tile so the logits store is unmasked).
            zpad = ([jnp.zeros((out_rows - B, D_MODEL), jnp.float32)]
                    if out_rows > B else [])
            cls_attn = jnp.concatenate(
                [image_attention(b, 1) for b in range(B)] + zpad, axis=0)      # (out_rows, D)
            cls_attn = jnp.dot(cls_attn.astype(jnp.bfloat16), proj_w_ref[0],
                               preferred_element_type=jnp.float32) + proj_b
            cls_x = jnp.concatenate(
                [x[b * SEQ_PAD:b * SEQ_PAD + 1, :] for b in range(B)] + zpad, axis=0)
            cls = ffn(cls_x + cls_attn)
            cls = _layernorm(cls, norm_g_ref[...], norm_b_ref[...])
            # exact (non-approx) normalization for the margin-sensitive cosine head
            nrm = jnp.maximum(jnp.sqrt(jnp.sum(cls * cls, axis=-1, keepdims=True)), 1e-12)
            fn = cls / nrm
            # CosineLinear: sigma and weight normalization already folded into head_w
            out_ref[...] = jnp.dot(fn.astype(jnp.bfloat16), head_w_ref[...],
                                   preferred_element_type=jnp.float32)

        # TODO(synk): on v7x add a leading "parallel" grid axis over image shards (with a
        # per-shard residual scratch) so both TensorCores are used; v5e/v6e are single-TC.

    # ------------------------------ specs -------------------------------
    def layer_spec(a):    # one transformer block's slice, streamed + double-buffered
        return pl.BlockSpec((1,) + a.shape[1:], lambda l: (l, 0, 0))

    def res_spec(a):      # small resident tensors (final LN + cosine head only)
        nd = a.ndim
        return pl.BlockSpec(a.shape, lambda l, _n=nd: (0,) * _n)

    layer_in = [qkv_w, proj_w, fc1_w, fc2_w, ad_dn_w, ad_up_w, misc]
    tail_in = [norm_g, norm_b, head_w]

    out = pl.pallas_call(
        kernel,
        out_shape=jax.ShapeDtypeStruct((out_rows, CLASS_PAD), jnp.float32),
        grid=(NUM_BLOCKS,),                                   # grid over transformer blocks
        in_specs=([pl.BlockSpec(memory_space=pl.ANY)]         # embedded tokens stay in HBM
                  + [layer_spec(a) for a in layer_in]
                  + [res_spec(a) for a in tail_in]),
        out_specs=pl.BlockSpec((out_rows, CLASS_PAD), lambda l: (0, 0)),
        scratch_shapes=[pltpu.VMEM((M_PAD, D_MODEL), jnp.float32)],   # residual stream
        compiler_params=pltpu.CompilerParams(
            dimension_semantics=("arbitrary",),               # layer axis is sequential
            vmem_limit_bytes=64 * 1024 * 1024),
    )(x0, *layer_in, *tail_in)
    return out[:B, :NUM_CLASSES]


# ---------------- pure-JAX f32 reference (for correctness check) ----------------
def reference_forward(x_nchw, params):
    B = x_nchw.shape[0]
    patches = _extract_patches(x_nchw).astype(jnp.float32)
    tok = patches @ params['patch_w'] + params['patch_b']
    cls = jnp.broadcast_to(params['cls'][None], (B, 1, D_MODEL))
    x = jnp.concatenate([cls, tok], axis=1) + params['pos'][None]
    for l in range(NUM_BLOCKS):
        h = _layernorm(x, params['ln1_g'][l], params['ln1_b'][l])
        qkv = h @ params['qkv_w'][l] + params['qkv_b'][l]
        q, k, v = jnp.split(qkv, 3, axis=-1)
        outs = []
        for hd in range(NUM_HEADS):
            sl = slice(hd * HEAD_DIM, (hd + 1) * HEAD_DIM)
            s = jnp.einsum('bqd,bkd->bqk', q[..., sl] * (HEAD_DIM ** -0.5), k[..., sl])
            s = s - jnp.max(s, axis=-1, keepdims=True)
            p = jnp.exp(s)
            p = p / jnp.sum(p, axis=-1, keepdims=True)
            outs.append(jnp.einsum('bqk,bkd->bqd', p, v[..., sl]))
        attn = jnp.concatenate(outs, axis=-1) @ params['proj_w'][l] + params['proj_b'][l]
        x = x + attn
        ad = jnp.maximum(x @ params['ad_dn_w'][l] + params['ad_dn_b'][l], 0.0)
        ad = (ad @ params['ad_up_w'][l] + params['ad_up_b'][l]) * ADAPTER_SCALE
        h2 = _layernorm(x, params['ln2_g'][l], params['ln2_b'][l])
        m = jax.nn.gelu(h2 @ params['fc1_w'][l] + params['fc1_b'][l])
        m = m @ params['fc2_w'][l] + params['fc2_b'][l]
        x = x + m + ad
    x = _layernorm(x, params['norm_g'][0], params['norm_b'][0])
    feat = x[:, 0, :]
    fn = feat / jnp.maximum(jnp.sqrt(jnp.sum(feat * feat, axis=1, keepdims=True)), 1e-12)
    w = params['fc_w']
    wn = w / jnp.maximum(jnp.sqrt(jnp.sum(w * w, axis=1, keepdims=True)), 1e-12)
    return params['sigma'][0, 0] * (fn @ wn.T)


# ---------------- deterministic parameter init ----------------
def init_params(key):
    ks = jax.random.split(key, 16)
    nrm = lambda k, shape, s=0.02: (s * jax.random.normal(k, shape)).astype(jnp.float32)
    L, D = NUM_BLOCKS, D_MODEL
    return dict(
        patch_w=nrm(ks[0], (PATCH_DIM, D)),
        patch_b=nrm(ks[1], (D,)),
        cls=nrm(ks[2], (1, D)),
        pos=nrm(ks[3], (SEQ, D)),
        ln1_g=jnp.ones((L, D), jnp.float32), ln1_b=jnp.zeros((L, D), jnp.float32),
        qkv_w=nrm(ks[4], (L, D, 3 * D)), qkv_b=nrm(ks[5], (L, 3 * D)),
        proj_w=nrm(ks[6], (L, D, D)), proj_b=nrm(ks[7], (L, D)),
        ln2_g=jnp.ones((L, D), jnp.float32), ln2_b=jnp.zeros((L, D), jnp.float32),
        fc1_w=nrm(ks[8], (L, D, MLP_DIM)), fc1_b=nrm(ks[9], (L, MLP_DIM)),
        fc2_w=nrm(ks[10], (L, MLP_DIM, D)), fc2_b=nrm(ks[11], (L, D)),
        ad_dn_w=nrm(ks[12], (L, D, FFN_NUM)), ad_dn_b=jnp.zeros((L, FFN_NUM), jnp.float32),
        ad_up_w=nrm(ks[13], (L, FFN_NUM, D)), ad_up_b=jnp.zeros((L, D), jnp.float32),
        norm_g=jnp.ones((1, D), jnp.float32), norm_b=jnp.zeros((1, D), jnp.float32),
        fc_w=nrm(ks[14], (NUM_CLASSES, D), s=0.1),      # CosineLinear weight
        sigma=jnp.ones((1, 1), jnp.float32),            # CosineLinear sigma
    )


if __name__ == "__main__":
    key = jax.random.PRNGKey(0)
    pkey, xkey = jax.random.split(key)
    params = init_params(pkey)
    x = jax.random.normal(xkey, (BATCH, IN_CH, IMG, IMG), dtype=jnp.float32)

    out = adapter_vit_forward(x, params)
    out = jax.block_until_ready(out)
    assert out.shape == (BATCH, NUM_CLASSES), out.shape

    ref = reference_forward(x, params)
    max_err = float(jnp.max(jnp.abs(out - ref)))
    # bf16 MXU inputs (f32 accumulation) vs. the pure-f32 reference => ~1e-2 level tolerance
    if not jnp.allclose(out, ref, atol=2e-2, rtol=2e-2):
        raise AssertionError(f"Pallas kernel mismatch vs reference (max abs err={max_err})")
    print("KERNEL_OK")
</pallas_src>

<mosaic_0001>
module attributes {stable_mosaic.version = 11 : i64} {
  func.func @embed_kernel(%arg0: memref<48x48xbf16, #tpu.memory_space<vmem>>, %arg1: memref<48x32xbf16, #tpu.memory_space<vmem>>, %arg2: memref<48x32xf32, #tpu.memory_space<vmem>>, %arg3: memref<48x32xf32, #tpu.memory_space<vmem>>) attributes {dimension_semantics = [], scalar_prefetch = 0 : i64, scratch_operands = 0 : i64, tpu.core_type = #tpu.core_type<tc>} {
    %c0 = arith.constant 0 : index
    %c0_0 = arith.constant 0 : index
    %0 = vector.load %arg0[%c0, %c0_0] : memref<48x48xbf16, #tpu.memory_space<vmem>>, vector<48x48xbf16>
    %c0_1 = arith.constant 0 : index
    %c0_2 = arith.constant 0 : index
    %1 = vector.load %arg1[%c0_1, %c0_2] : memref<48x32xbf16, #tpu.memory_space<vmem>>, vector<48x32xbf16>
    %cst = arith.constant dense<0.000000e+00> : vector<48x32xf32>
    %2 = tpu.matmul %0, %1, %cst {dimension_numbers = #tpu.dot_dimension_numbers<[1], [0], [0], [1], [0, 0, 1, 1], [], []>} : vector<48x48xbf16>, vector<48x32xbf16>, vector<48x32xf32> -> vector<48x32xf32>
    %c0_3 = arith.constant 0 : index
    %c0_4 = arith.constant 0 : index
    %3 = vector.load %arg2[%c0_3, %c0_4] : memref<48x32xf32, #tpu.memory_space<vmem>>, vector<48x32xf32>
    %4 = arith.addf %2, %3 : vector<48x32xf32>
    %c0_5 = arith.constant 0 : index
    %c0_6 = arith.constant 0 : index
    %5 = vector.load %arg3[%c0_5, %c0_6] : memref<48x32xf32, #tpu.memory_space<vmem>>, vector<48x32xf32>
    tpu.vector_store %arg3[%c0_5, %c0_6], %4 {strides = array<i32>} : memref<48x32xf32, #tpu.memory_space<vmem>>, vector<48x32xf32>,
    return
  }
}

</mosaic_0001>

<llo_original>
// kernel: tpu_custom_call.1
$region0: #{tpu_custom_call.1}
  #allocation0 [shape = 'u32[]', space=smem, size = 0x4, offset = 0x4, fixed_abs, tag = 'smem constant byte address 0x4 - core index']
  #allocation1 [shape = 'u32[72,128]{1,0:T(1,128)}', space=vmem, size = 0x9000, scoped, tag = 'internal scratch']
  %s0 = inlined_call_operand.vmem [shape: bf16[48,48], index: 0, kind: input, shape index: {}]
  %s1 = inlined_call_operand.vmem [shape: bf16[48,32], index: 1, kind: input, shape index: {}]
  %s2 = inlined_call_operand.vmem [shape: f32[48,32], index: 2, kind: input, shape index: {}]
  %s3 = inlined_call_operand.vmem [shape: f32[48,32], index: 3, kind: output, shape index: {}]
  %s4 = sld [smem:[#allocation0]]
  $region22: #{tpu_custom_call.1} parent=0
    _
  %s6 = ssub.s32 1, %s4
  %s7 = scalar_select 0, %s6, %s4
  // Predicated region
  $region2: #{tpu_custom_call.1} parent=0 // pred_check
    _
  $region3: #{tpu_custom_call.1} parent=0 // pred_check_branch
    %9 = sbr.rel (0) target = $region5
  $region4: #{tpu_custom_call.1} parent=0 // pred_region
    _
  $region5: #{tpu_custom_call.1} parent=0 // pred_fallthru
    _
  // Predicated region
  $region6: #{tpu_custom_call.1} parent=0 // pred_check
    _
  $region7: #{tpu_custom_call.1} parent=0 // pred_check_branch
    %11 = sbr.rel (0) target = $region9
  $region8: #{tpu_custom_call.1} parent=0 // pred_region
    _
  $region9: #{tpu_custom_call.1} parent=0 // pred_fallthru
    _
  // Predicated region
  $region10: #{tpu_custom_call.1} parent=0 // pred_check
    _
  $region11: #{tpu_custom_call.1} parent=0 // pred_check_branch
    %13 = sbr.rel (0) target = $region13
  $region12: #{tpu_custom_call.1} parent=0 // pred_region
    _
  $region13: #{tpu_custom_call.1} parent=0 // pred_fallthru
    _
  %v15 = vld [vmem:[%s0] sm:$0xf]
  %v16 = vld [vmem:[%s0 + $0x4] sm:$0xf]
  %v17 = vld [vmem:[%s0 + $0x8] sm:$0xf]
  %v18 = vld [vmem:[%s0 + $0xc] sm:$0xf]
  %v19 = vld [vmem:[%s0 + $0x10] sm:$0xf]
  %v20 = vld [vmem:[%s0 + $0x14] sm:$0xf]
  %v21 = vld [vmem:[%s1] sm:$0xf]
  %v22 = vld [vmem:[%s1 + $0x4] sm:$0xf]
  %v23 = vld [vmem:[%s1 + $0x8] sm:$0xf]
  %v24 = vld [vmem:[%s1 + $0xc] sm:$0xf]
  %v25 = vld [vmem:[%s1 + $0x10] sm:$0xf]
  %v26 = vld [vmem:[%s1 + $0x14] sm:$0xf]
  %v27 = vld [vmem:[%s2] sm:$0xff]
  %v28 = vld [vmem:[%s2 + $0x8] sm:$0xff]
  %v29 = vld [vmem:[%s2 + $0x10] sm:$0xff]
  %v30 = vld [vmem:[%s2 + $0x18] sm:$0xff]
  %v31 = vld [vmem:[%s2 + $0x20] sm:$0xff]
  %v32 = vld [vmem:[%s2 + $0x28] sm:$0xff]
  %v39 = vunpack.c.l.b16 %v15
  %v40 = vunpack.c.l.b16 %v16
  %v41 = vunpack.c.l.b16 %v17
  %v42 = vunpack.c.l.b16 %v18
  %v43 = vunpack.c.l.b16 %v19
  %v44 = vunpack.c.l.b16 %v20
  %v45 = vpack.c.b16 %v40, %v39
  %v46 = vpack.c.b16 %v42, %v41
  %v47 = vpack.c.b16 %v44, %v43
  %v54 = vunpack.c.l.b16 %v21
  %v55 = vunpack.c.l.b16 %v22
  %v56 = vunpack.c.l.b16 %v23
  %v57 = vunpack.c.l.b16 %v24
  %v58 = vunpack.c.l.b16 %v25
  %v59 = vunpack.c.l.b16 %v26
  %v60 = vpack.c.b16 %v55, %v54
  %v61 = vpack.c.b16 %v57, %v56
  %v62 = vpack.c.b16 %v59, %v58
  %vm66 = vcmask 392192
  %v68 = vsel %vm66, %v45, 0
  %v71 = vsel %vm66, %v46, 0
  %v74 = vsel %vm66, %v47, 0
  %76 = vmatpush.bf16.msra.mxu0 0
  %77 = vmatpush.bf16.msra.mxu0 0
  %78 = vmatpush.bf16.msra.mxu0 0
  %79 = vmatpush.bf16.msra.mxu0 0
  %80 = vmatpush.bf16.msra.mxu0 0
  %81 = vmatpush.bf16.msra.mxu0 %v62
  %82 = vmatpush.bf16.msra.mxu0 %v61
  %83 = vmatpush.bf16.msra.mxu0 %v60
  %84 = vmatmul.bf16.gmra.mxu0 %v68
  %v85 = vpop.f32.mrf.mxu0
  %v86 = vadd.f32 %v27, %v85
  %v87 = vpop.f32.mrf.mxu0
  %v88 = vadd.f32 %v28, %v87
  %89 = vmatmul.bf16.gmra.mxu0 %v71
  %v90 = vpop.f32.mrf.mxu0
  %v91 = vadd.f32 %v29, %v90
  %v92 = vpop.f32.mrf.mxu0
  %v93 = vadd.f32 %v30, %v92
  %94 = vmatmul.bf16.gmra.mxu0 %v74
  %v95 = vpop.f32.mrf.mxu0
  %v96 = vadd.f32 %v31, %v95
  %v97 = vpop.f32.mrf.mxu0
  %v98 = vadd.f32 %v32, %v97
  %99 = vdwg.mxu0
  %vm100 = vcmask 261120
  %101 = vst.msk [vmem:[%s3] sm:$0xff] %vm100, %v86
  %102 = vst.msk [vmem:[%s3 + $0x8] sm:$0xff] %vm100, %v88
  %103 = vst.msk [vmem:[%s3 + $0x10] sm:$0xff] %vm100, %v91
  %104 = vst.msk [vmem:[%s3 + $0x18] sm:$0xff] %vm100, %v93
  %105 = vst.msk [vmem:[%s3 + $0x20] sm:$0xff] %vm100, %v96
  %106 = vst.msk [vmem:[%s3 + $0x28] sm:$0xff] %vm100, %v98
  // Predicated region
  $region14: #{tpu_custom_call.1} parent=0 // pred_check
    _
  $region15: #{tpu_custom_call.1} parent=0 // pred_check_branch
    %108 = sbr.rel (0) target = $region17
  $region16: #{tpu_custom_call.1} parent=0 // pred_region
    _
  $region17: #{tpu_custom_call.1} parent=0 // pred_fallthru
    _
  // Predicated region
  $region18: #{tpu_custom_call.1} parent=0 // pred_check
    _
  $region19: #{tpu_custom_call.1} parent=0 // pred_check_branch
    %110 = sbr.rel (0) target = $region21
  $region20: #{tpu_custom_call.1} parent=0 // pred_region
    _
  $region21: #{tpu_custom_call.1} parent=0 // pred_fallthru
    _

</llo_original>
